<compile_context>
chip_gen: v6e
topology: v6e:2x2x1
jax: 0.10.0
libtpu: 0.0.40
codegen_flags: <defaults>
</compile_context>

<pallas_src>
from functools import partial

import jax
import jax.numpy as jnp
import numpy as np
from jax.experimental import pallas as pl
from jax.experimental.pallas import tpu as pltpu


def _unpool_kernel(x_ref, sel_ref, o_ref):
    """o = x @ sel, where sel is a 0/1 selection matrix (pure copy on the MXU)."""
    sel = sel_ref[...]
    if x_ref.dtype == jnp.bfloat16:
        # bf16 x {0,1} with f32 accumulation: exact copy of bf16 data.
        out = jnp.dot(x_ref[...], sel, preferred_element_type=jnp.float32)
    else:
        # Exact f32 (or f16) copy through the bf16 MXU: split x into three
        # bf16 pieces (hi/mid/lo, 8 mantissa bits each -> 24 bits total) and
        # recombine; each matmul column has exactly one nonzero (1.0) term.
        x = x_ref[...].astype(jnp.float32)
        hi = x.astype(jnp.bfloat16)
        r1 = x - hi.astype(jnp.float32)
        mid = r1.astype(jnp.bfloat16)
        lo = (r1 - mid.astype(jnp.float32)).astype(jnp.bfloat16)
        out = (jnp.dot(hi, sel, preferred_element_type=jnp.float32)
               + jnp.dot(mid, sel, preferred_element_type=jnp.float32)
               + jnp.dot(lo, sel, preferred_element_type=jnp.float32))
    o_ref[...] = out.astype(o_ref.dtype)


def _choose_pack(M, W, pool):
    """Pack k consecutive input rows into one kernel row so the kernel input
    width (k*W) and output width (pool^2*k*W) are lane-dense."""
    k = 1
    while ((k * W < 128 or pool * pool * k * W < 256)
           and M % (2 * k) == 0 and M // (2 * k) >= 32 and k < 256):
        k *= 2
    return k


def _choose_row_tile(Mp, per_row_bytes, budget_bytes):
    """Rows per grid step: multiple of 8 (or full extent), within the VMEM
    budget, and small enough that the parallel grid has >= 2 programs."""
    if Mp <= 16:
        return Mp, False                       # tiny problem: single block
    cap = int(budget_bytes // max(per_row_bytes, 1))
    cap = min(cap, 1024, (Mp // 2) // 8 * 8)   # >= 2 grid steps
    cap = max(8, cap - cap % 8)
    t = cap
    while t >= 8:
        if Mp % t == 0:
            break
        t -= 8
    if t >= 8 and t * 8 >= cap:                # divisor reasonably close to cap
        return t, False
    return cap, True                           # awkward M: ceil-div grid + pad


@partial(jax.jit, static_argnames=("pool",))
def unpooling2d_nearest(x, pool=2):
    """Nearest-neighbour unpooling: (N, C, H, W) -> (N, C, pool*H, pool*W)."""
    N, C, H, W = x.shape
    M = N * C * H
    Wp = pool * W

    # ---- lane packing for narrow feature maps ------------------------------
    k = _choose_pack(M, W, pool)
    Mp = M // k
    Wk = k * W                  # kernel input width  (lanes)
    Do = k * pool * Wp          # kernel output width (= pool^2 * k * W lanes)

    # ---- grid-invariant 0/1 selection matrix (fused row+column repeat) -----
    # Packed row u:  out[u, a*pool*Wp + r*Wp + (pool*j + s)] = x[u, a*W + j]
    d = jnp.arange(Do)
    src = (d // (pool * Wp)) * W + (d % Wp) // pool
    sel = (jnp.arange(Wk)[:, None] == src[None, :]).astype(jnp.bfloat16)
    # TODO(synk): for very large W (>= ~1024) `sel` grows as O(pool^2 * W^2);
    # add a column-tiling grid axis with a per-chunk selection matrix instead.

    # ---- row tiling under a VMEM budget -------------------------------------
    itemsize = jnp.dtype(x.dtype).itemsize
    sel_bytes = 2 * 2 * Wk * Do                       # double-buffered bf16 sel
    per_row = 2 * itemsize * (Wk + Do)                # double-buffered in + out
    budget = max(8 * 1024 * 1024 - sel_bytes, 1 << 20)
    Mt, needs_pad = _choose_row_tile(Mp, per_row, budget)

    x2 = x.reshape(Mp, Wk)                            # contiguous, no copy
    if needs_pad:
        G = -(-Mp // Mt)
        x2 = jnp.pad(x2, ((0, G * Mt - Mp), (0, 0)))  # rare fallback path
    else:
        G = Mp // Mt

    out2 = pl.pallas_call(
        _unpool_kernel,
        out_shape=jax.ShapeDtypeStruct((G * Mt, Do), x.dtype),
        grid=(G,),
        in_specs=[
            pl.BlockSpec((Mt, Wk), lambda m: (m, 0)),   # streaming input rows
            pl.BlockSpec((Wk, Do), lambda m: (0, 0)),   # resident selection mat
        ],
        out_specs=pl.BlockSpec((Mt, Do), lambda m: (m, 0)),   # lane-dense out
        compiler_params=pltpu.CompilerParams(
            dimension_semantics=("parallel",),
            vmem_limit_bytes=32 * 1024 * 1024),
    )(x2, sel)

    if needs_pad:
        out2 = out2[:Mp]
    return out2.reshape(N, C, pool * H, Wp)           # contiguous, no copy


def unpooling2d_ref(x, pool=2):
    """Pure-JAX reference of nn.Upsample(scale_factor=pool, mode='nearest')."""
    return jnp.repeat(jnp.repeat(x, pool, axis=2), pool, axis=3)


# TODO(synk): UnPooling2d's type='bilinear' (align_corners interpolation) and
# type='conv' (ConvTranspose2d) branches are not implemented; this kernel
# covers the default type='nearest' path only.  Integer dtypes are routed
# through the float path and are only exact for |x| < 2^24.

if __name__ == "__main__":
    key = jax.random.PRNGKey(0)
    k1, k2, k3 = jax.random.split(key, 3)

    # 1) float32, small NCHW: exercises the exact 3-way bf16-split path,
    #    lane packing (W=16 -> 256-lane output blocks) and a 2-step grid.
    x1 = jax.random.normal(k1, (2, 4, 16, 16), dtype=jnp.float32)
    y1 = jax.block_until_ready(unpooling2d_nearest(x1, pool=2))
    np.testing.assert_allclose(np.asarray(y1),
                               np.asarray(unpooling2d_ref(x1, pool=2)),
                               rtol=1e-6, atol=1e-7)

    # 2) bfloat16 end-to-end (half the HBM traffic), multi-step parallel grid.
    x2 = jax.random.normal(k2, (2, 8, 32, 32), dtype=jnp.bfloat16)
    y2 = jax.block_until_ready(unpooling2d_nearest(x2, pool=2))
    np.testing.assert_allclose(
        np.asarray(y2.astype(jnp.float32)),
        np.asarray(unpooling2d_ref(x2, pool=2).astype(jnp.float32)),
        rtol=1e-6, atol=1e-7)

    # 3) odd shape + pool=3: small-block / ceil-div + padding fallback path.
    x3 = jax.random.normal(k3, (1, 3, 10, 12), dtype=jnp.float32)
    y3 = jax.block_until_ready(unpooling2d_nearest(x3, pool=3))
    np.testing.assert_allclose(np.asarray(y3),
                               np.asarray(unpooling2d_ref(x3, pool=3)),
                               rtol=1e-6, atol=1e-7)

    print("KERNEL_OK")
</pallas_src>

<mosaic_0001>
module attributes {stable_mosaic.version = 11 : i64} {
  func.func @_unpool_kernel(%arg0: i32, %arg1: memref<16x64xf32, #tpu.memory_space<vmem>>, %arg2: memref<64x256xbf16, #tpu.memory_space<vmem>>, %arg3: memref<16x256xf32, #tpu.memory_space<vmem>>) attributes {dimension_semantics = [#tpu.dimension_semantics<parallel>], iteration_bounds = array<i64: 2>, scalar_prefetch = 0 : i64, scratch_operands = 0 : i64, tpu.core_type = #tpu.core_type<tc>, window_params = [{transform_indices = @transform_0, window_bounds = array<i64: 16, 64>}, {pipeline_mode = #tpu.pipeline_mode<synchronous>, transform_indices = @transform_1, window_bounds = array<i64: 64, 256>}, {transform_indices = @transform_2, window_bounds = array<i64: 16, 256>}]} {
    %c0 = arith.constant 0 : index
    %c0_0 = arith.constant 0 : index
    %0 = vector.load %arg2[%c0, %c0_0] : memref<64x256xbf16, #tpu.memory_space<vmem>>, vector<64x256xbf16>
    %c0_1 = arith.constant 0 : index
    %c0_2 = arith.constant 0 : index
    %1 = vector.load %arg1[%c0_1, %c0_2] : memref<16x64xf32, #tpu.memory_space<vmem>>, vector<16x64xf32>
    %2 = arith.truncf %1 : vector<16x64xf32> to vector<16x64xbf16>
    %3 = arith.extf %2 : vector<16x64xbf16> to vector<16x64xf32>
    %4 = arith.subf %1, %3 : vector<16x64xf32>
    %5 = arith.truncf %4 : vector<16x64xf32> to vector<16x64xbf16>
    %6 = arith.extf %5 : vector<16x64xbf16> to vector<16x64xf32>
    %7 = arith.subf %4, %6 : vector<16x64xf32>
    %8 = arith.truncf %7 : vector<16x64xf32> to vector<16x64xbf16>
    %cst = arith.constant dense<0.000000e+00> : vector<16x256xf32>
    %9 = tpu.matmul %2, %0, %cst {dimension_numbers = #tpu.dot_dimension_numbers<[1], [0], [0], [1], [0, 0, 1, 1], [], []>} : vector<16x64xbf16>, vector<64x256xbf16>, vector<16x256xf32> -> vector<16x256xf32>
    %cst_3 = arith.constant dense<0.000000e+00> : vector<16x256xf32>
    %10 = tpu.matmul %5, %0, %cst_3 {dimension_numbers = #tpu.dot_dimension_numbers<[1], [0], [0], [1], [0, 0, 1, 1], [], []>} : vector<16x64xbf16>, vector<64x256xbf16>, vector<16x256xf32> -> vector<16x256xf32>
    %11 = arith.addf %9, %10 : vector<16x256xf32>
    %cst_4 = arith.constant dense<0.000000e+00> : vector<16x256xf32>
    %12 = tpu.matmul %8, %0, %cst_4 {dimension_numbers = #tpu.dot_dimension_numbers<[1], [0], [0], [1], [0, 0, 1, 1], [], []>} : vector<16x64xbf16>, vector<64x256xbf16>, vector<16x256xf32> -> vector<16x256xf32>
    %13 = arith.addf %11, %12 : vector<16x256xf32>
    %c0_5 = arith.constant 0 : index
    %c0_6 = arith.constant 0 : index
    %14 = vector.load %arg3[%c0_5, %c0_6] : memref<16x256xf32, #tpu.memory_space<vmem>>, vector<16x256xf32>
    tpu.vector_store %arg3[%c0_5, %c0_6], %13 {strides = array<i32>} : memref<16x256xf32, #tpu.memory_space<vmem>>, vector<16x256xf32>,
    return
  }
  func.func @transform_0(%arg0: i32) -> (i32, i32) {
    %c0_i32 = arith.constant 0 : i32
    %c0_i32_0 = arith.constant 0 : i32
    return %arg0, %c0_i32 : i32, i32
  }
  func.func @transform_1(%arg0: i32) -> (i32, i32) {
    %c0_i32 = arith.constant 0 : i32
    %c0_i32_0 = arith.constant 0 : i32
    %c0_i32_1 = arith.constant 0 : i32
    return %c0_i32, %c0_i32_0 : i32, i32
  }
  func.func @transform_2(%arg0: i32) -> (i32, i32) {
    %c0_i32 = arith.constant 0 : i32
    %c0_i32_0 = arith.constant 0 : i32
    return %arg0, %c0_i32 : i32, i32
  }
}

</mosaic_0001>

<llo_original>
// kernel: unpooling2d_nearest.1
$region0: #{unpooling2d_nearest.1}
  #allocation0 [shape = 'u32[]', space=smem, size = 0x4, offset = 0x4, fixed_abs, tag = 'smem constant byte address 0x4 - core index']
  #allocation1 [shape = 'u32[144,128]{1,0:T(1,128)}', space=vmem, size = 0x12000, scoped, tag = 'internal scratch']
  %s0 = inlined_call_operand.vmem [shape: f32[32,64], index: 0, kind: input, shape index: {}]
  %s1 = inlined_call_operand.vmem [shape: bf16[64,256], index: 1, kind: input, shape index: {}]
  %s2 = inlined_call_operand.vmem [shape: f32[32,256], index: 2, kind: output, shape index: {}]
  %s3 = sld [smem:[#allocation0]]
  $region41: #{unpooling2d_nearest.1} parent=0
    _
  %s5 = ssub.s32 1, %s3
  %s6 = scalar_select 0, %s5, %s3
  loop: start=0, step=1, limit=4
  $region2: #{unpooling2d_nearest.1} parent=0 // loop_pre_header
    _
  $region3: #{unpooling2d_nearest.1} parent=0 // loop_header
    %s8 = sphi 0, %s12
    %p9 = scmp.ge.s32.totalorder %s8, 4
    %s18 = sphi 0, %s20
    %s21 = sphi 0, %s18
    %s22 = sphi 0, %s21
    %s38 = sphi 0, %s22
    %s42 = sphi 0, %s42
    %s44 = sphi 0, %s42
    %s45 = sphi 0, %s44
    %s59 = sphi 0, %s45
    %s65 = sphi 0, %s67
    %s68 = sphi 0, %s65
    %s69 = sphi 0, %s68
    %s85 = sphi 0, %s69
  $region4: #{unpooling2d_nearest.1} parent=0 // loop_header_branch
    %11 = sbr.rel (%p9) target = $region8
  $region5: #{unpooling2d_nearest.1} parent=0 // loop_body
    %s13 = ssub.s32 %s8, 1
    %s14 = ssub.s32 %s8, 2
    %s15 = sadd.s32 %s8, 1
    %s16 = ssub.s32 %s8, %s15
    %p17 = scmp.eq.s32.totalorder %s16, 0
    %s19 = sadd.s32 %s18, 1
    %s20 = scalar_select %p17, %s18, %s19
    %p23 = pneg %p17
    %p24 = scmp.eq.s32.totalorder %s8, 1
    %p25 = por %p23, %p24
    %p26 = scmp.ne.s32.totalorder %s18, %s21
    %p27 = scmp.eq.s32.totalorder %s8, 0
    %p28 = por %p26, %p27
    %p29 = scmp.ne.s32.totalorder %s18, %s21
    %p30 = scmp.eq.s32.totalorder %s13, 1
    %p31 = por %p29, %p30
    %p32 = scmp.ne.s32.totalorder %s21, %s22
    %p33 = scmp.eq.s32.totalorder %s13, 0
    %p34 = por %p32, %p33
    %p35 = scmp.ne.s32.totalorder %s21, %s22
    %p36 = scmp.eq.s32.totalorder %s14, 1
    %p37 = por %p35, %p36
    %p39 = scmp.ne.s32.totalorder %s22, %s38
    %p40 = scmp.eq.s32.totalorder %s14, 0
    %p41 = por %p39, %p40
    %s43 = sadd.s32 %s42, 1
    %p46 = scmp.eq.s32.totalorder %s8, 1
    %p47 = scmp.ne.s32.totalorder %s42, %s44
    %p48 = scmp.eq.s32.totalorder %s8, 0
    %p49 = por %p47, %p48
    %p50 = scmp.ne.s32.totalorder %s42, %s44
    %p51 = scmp.eq.s32.totalorder %s13, 1
    %p52 = por %p50, %p51
    %p53 = scmp.ne.s32.totalorder %s44, %s45
    %p54 = scmp.eq.s32.totalorder %s13, 0
    %p55 = por %p53, %p54
    %p56 = scmp.ne.s32.totalorder %s44, %s45
    %p57 = scmp.eq.s32.totalorder %s14, 1
    %p58 = por %p56, %p57
    %p60 = scmp.ne.s32.totalorder %s45, %s59
    %p61 = scmp.eq.s32.totalorder %s14, 0
    %p62 = por %p60, %p61
    %s63 = ssub.s32 %s8, %s15
    %p64 = scmp.eq.s32.totalorder %s63, 0
    %s66 = sadd.s32 %s65, 1
    %s67 = scalar_select %p64, %s65, %s66
    %p70 = pneg %p64
    %p71 = scmp.eq.s32.totalorder %s8, 1
    %p72 = por %p70, %p71
    %p73 = scmp.ne.s32.totalorder %s65, %s68
    %p74 = scmp.eq.s32.totalorder %s8, 0
    %p75 = por %p73, %p74
    %p76 = scmp.ne.s32.totalorder %s65, %s68
    %p77 = scmp.eq.s32.totalorder %s13, 1
    %p78 = por %p76, %p77
    %p79 = scmp.ne.s32.totalorder %s68, %s69
    %p80 = scmp.eq.s32.totalorder %s13, 0
    %p81 = por %p79, %p80
    %p82 = scmp.ne.s32.totalorder %s68, %s69
    %p83 = scmp.eq.s32.totalorder %s14, 1
    %p84 = por %p82, %p83
    %p86 = scmp.ne.s32.totalorder %s69, %s85
    %p87 = scmp.eq.s32.totalorder %s14, 0
    %p88 = por %p86, %p87
    %p89 = scmp.le.s32.totalorder 1, %s8
    %p90 = scmp.lt.s32.totalorder %s8, 3
    %p91 = pnand %p89, %p90
    %p92 = pneg %p91
    // Predicated region
    $region9: #{unpooling2d_nearest.1} parent=5 // pred_check
      _
    $region10: #{unpooling2d_nearest.1} parent=5 // pred_check_branch
      %94 = sbr.rel (%p91) target = $region12
    $region11: #{unpooling2d_nearest.1} parent=5 // pred_region
      %s95 = ssub.s32 %s8, 1
      // Predicated region
      $region13: #{unpooling2d_nearest.1} parent=11 // pred_check
        %p96 = pneg %p55
      $region14: #{unpooling2d_nearest.1} parent=11 // pred_check_branch
        %98 = sbr.rel (%p96) target = $region16
      $region15: #{unpooling2d_nearest.1} parent=11 // pred_region
        _
      $region16: #{unpooling2d_nearest.1} parent=11 // pred_fallthru
        _
    $region12: #{unpooling2d_nearest.1} parent=5 // pred_fallthru
      _
    %p99 = scmp.lt.s32.totalorder %s8, 2
    // Predicated region
    $region17: #{unpooling2d_nearest.1} parent=5 // pred_check
      %p100 = pneg %p99
    $region18: #{unpooling2d_nearest.1} parent=5 // pred_check_branch
      %102 = sbr.rel (%p100) target = $region20
    $region19: #{unpooling2d_nearest.1} parent=5 // pred_region
      // Predicated region
      $region21: #{unpooling2d_nearest.1} parent=19 // pred_check
        %p103 = pneg %p28
      $region22: #{unpooling2d_nearest.1} parent=19 // pred_check_branch
        %105 = sbr.rel (%p103) target = $region24
      $region23: #{unpooling2d_nearest.1} parent=19 // pred_region
        %s106 = smul.u32 2, %s8
        %p107 = scmp.lt.s32.totalorder %s106, 3
        %s108 = scalar_select %p107, %s106, 3
        %s109 = smul.addr %s108, 8
        %s110 = scalar_lea.vmem %s0, %s109
        %s111 = smul.u32 2, %s8
      $region24: #{unpooling2d_nearest.1} parent=19 // pred_fallthru
        _
    $region20: #{unpooling2d_nearest.1} parent=5 // pred_fallthru
      _
    %p112 = scmp.le.s32.totalorder 1, %s8
    %p113 = scmp.lt.s32.totalorder %s8, 3
    %p114 = pnand %p112, %p113
    %p115 = pneg %p114
    // Predicated region
    $region25: #{unpooling2d_nearest.1} parent=5 // pred_check
      _
    $region26: #{unpooling2d_nearest.1} parent=5 // pred_check_branch
      %117 = sbr.rel (%p114) target = $region28
    $region27: #{unpooling2d_nearest.1} parent=5 // pred_region
      %s118 = ssub.s32 %s8, 1
      %s119 = smul.u32 2, %s13
      %p120 = scmp.lt.s32.totalorder %s119, 3
      %s121 = scalar_select %p120, %s119, 3
      %s122 = smul.addr %s121, 8
      %s123 = scalar_lea.vmem %s0, %s122
      %p124 = pneg %p34
      %p125 = pneg %p31
      %p126 = pneg %p55
      %p127 = pneg %p52
      %p128 = pneg %p81
      %p129 = pneg %p78
      %s130 = smul.u32 2, %s13
      %p131 = scmp.lt.s32.totalorder %s130, 3
      %s132 = scalar_select %p131, %s130, 3
      %s133 = smul.addr %s132, 2
      %s134 = smul.addr %s133, 8
      %s135 = scalar_lea.vmem %s2, %s134
      %s136 = smul.u32 2, %s13
      %p137 = scmp.lt.s32.totalorder %s136, 3
      %s138 = scalar_select %p137, %s136, 3
      %s139 = smul.addr %s138, 8
      %s140 = scalar_lea.vmem %s0, %s139
      %s141 = smul.u32 2, %s13
      %s142 = smul.u32 2, %s13
      %p143 = scmp.lt.s32.totalorder %s142, 3
      %s144 = scalar_select %p143, %s142, 3
      %s145 = smul.addr %s144, 2
      %s146 = smul.addr %s145, 8
      %s147 = scalar_lea.vmem %s2, %s146
      %s148 = smul.u32 2, %s13
      %v150 = vld [vmem:[%s1] sm:$0xff]
      %v151 = vld [vmem:[%s1 + $0x8] sm:$0xff]
      %v152 = vld [vmem:[%s1 + $0x10] sm:$0xff]
      %v153 = vld [vmem:[%s1 + $0x18] sm:$0xff]
      %v154 = vld [vmem:[%s1 + $0x20] sm:$0xff]
      %v155 = vld [vmem:[%s1 + $0x28] sm:$0xff]
      %v156 = vld [vmem:[%s1 + $0x30] sm:$0xff]
      %v157 = vld [vmem:[%s1 + $0x38] sm:$0xff]
      %v158 = vld [vmem:[%s140] sm:$0xff]
      %v159 = vld [vmem:[%s140 + $0x8] sm:$0xff]
      %v160 = vpack.c.bf16 %v159, %v158
      %v161 = vunpack.c.l.bf16 %v160
      %v162 = vunpack.c.h.bf16 %v160
      %v163 = vsub.f32 %v158, %v161
      %v164 = vsub.f32 %v159, %v162
      %v165 = vpack.c.bf16 %v164, %v163
      %v166 = vunpack.c.l.bf16 %v165
      %v167 = vunpack.c.h.bf16 %v165
      %v168 = vsub.f32 %v163, %v166
      %v169 = vsub.f32 %v164, %v167
      %v170 = vpack.c.bf16 %v169, %v168
      %v179 = vunpack.c.l.b16 %v150
      %v180 = vunpack.c.h.b16 %v150
      %v181 = vunpack.c.l.b16 %v151
      %v182 = vunpack.c.h.b16 %v151
      %v183 = vunpack.c.l.b16 %v152
      %v184 = vunpack.c.h.b16 %v152
      %v185 = vunpack.c.l.b16 %v153
      %v186 = vunpack.c.h.b16 %v153
      %v187 = vunpack.c.l.b16 %v154
      %v188 = vunpack.c.h.b16 %v154
      %v189 = vunpack.c.l.b16 %v155
      %v190 = vunpack.c.h.b16 %v155
      %v191 = vunpack.c.l.b16 %v156
      %v192 = vunpack.c.h.b16 %v156
      %v193 = vunpack.c.l.b16 %v157
      %v194 = vunpack.c.h.b16 %v157
      %v195 = vpack.c.b16 %v181, %v179
      %v196 = vpack.c.b16 %v182, %v180
      %v197 = vpack.c.b16 %v185, %v183
      %v198 = vpack.c.b16 %v186, %v184
      %v199 = vpack.c.b16 %v189, %v187
      %v200 = vpack.c.b16 %v190, %v188
      %v201 = vpack.c.b16 %v193, %v191
      %v202 = vpack.c.b16 %v194, %v192
      %vm211 = vcmask 523264
      %v213 = vsel %vm211, %v165, 0
      %215 = vmatprep.subr.bf16.mxu0 0
      %216 = vmatpush1.bf16.msra.mxu0 0
      %217 = vmatprep.subr.bf16.mxu0 0
      %218 = vmatpush1.bf16.msra.mxu0 0
      %219 = vmatprep.subr.bf16.mxu0 0
      %220 = vmatpush1.bf16.msra.mxu0 0
      %221 = vmatprep.subr.bf16.mxu0 0
      %222 = vmatpush1.bf16.msra.mxu0 0
      %223 = vmatprep.subr.bf16.mxu0 %v202
      %224 = vmatpush1.bf16.msra.mxu0 %v201
      %225 = vmatprep.subr.bf16.mxu0 %v200
      %226 = vmatpush1.bf16.msra.mxu0 %v199
      %227 = vmatprep.subr.bf16.mxu0 %v198
      %228 = vmatpush1.bf16.msra.mxu0 %v197
      %229 = vmatprep.subr.bf16.mxu0 %v196
      %230 = vmatpush1.bf16.msra.mxu0 %v195
      %231 = vmatprep.subr.bf16.mxu0 0
      %232 = vmatpush2.bf16.msra.mxu0 0
      %233 = vmatprep.subr.bf16.mxu0 0
      %234 = vmatpush2.bf16.msra.mxu0 0
      %235 = vmatprep.subr.bf16.mxu0 0
      %236 = vmatpush2.bf16.msra.mxu0 0
      %237 = vmatprep.subr.bf16.mxu0 0
      %238 = vmatpush2.bf16.msra.mxu0 0
      %239 = vmatprep.subr.bf16.mxu0 0
      %240 = vmatpush2.bf16.msra.mxu0 0
      %241 = vmatprep.subr.bf16.mxu0 0
      %242 = vmatpush2.bf16.msra.mxu0 0
      %243 = vmatprep.subr.bf16.mxu0 0
      %244 = vmatpush2.bf16.msra.mxu0 0
      %245 = vmatprep.subr.bf16.mxu0 0
      %246 = vmatpush2.bf16.msra.mxu0 0
      %247 = vmatprep.mubr.bf16.mxu0 0
      %248 = vmatmul.mubr.bf16.gmra.mxu0 %v213
      %v249 = vpop.f32.mrf.mxu0
      %v250 = vadd.f32 0.0, %v249
      %v251 = vpop.f32.mrf.mxu0
      %v252 = vadd.f32 0.0, %v251
      %v253 = vpop.f32.mrf.mxu0
      %v254 = vadd.f32 0.0, %v253
      %v255 = vpop.f32.mrf.mxu0
      %v256 = vadd.f32 0.0, %v255
      %257 = vdwg.mxu0
      %v259 = vsel %vm211, %v160, 0
      %261 = vmatprep.subr.bf16.mxu0 0
      %262 = vmatpush1.bf16.msra.mxu0 0
      %263 = vmatprep.subr.bf16.mxu0 0
      %264 = vmatpush1.bf16.msra.mxu0 0
      %265 = vmatprep.subr.bf16.mxu0 0
      %266 = vmatpush1.bf16.msra.mxu0 0
      %267 = vmatprep.subr.bf16.mxu0 0
      %268 = vmatpush1.bf16.msra.mxu0 0
      %269 = vmatprep.subr.bf16.mxu0 %v202
      %270 = vmatpush1.bf16.msra.mxu0 %v201
      %271 = vmatprep.subr.bf16.mxu0 %v200
      %272 = vmatpush1.bf16.msra.mxu0 %v199
      %273 = vmatprep.subr.bf16.mxu0 %v198
      %274 = vmatpush1.bf16.msra.mxu0 %v197
      %275 = vmatprep.subr.bf16.mxu0 %v196
      %276 = vmatpush1.bf16.msra.mxu0 %v195
      %277 = vmatprep.subr.bf16.mxu0 0
      %278 = vmatpush2.bf16.msra.mxu0 0
      %279 = vmatprep.subr.bf16.mxu0 0
      %280 = vmatpush2.bf16.msra.mxu0 0
      %281 = vmatprep.subr.bf16.mxu0 0
      %282 = vmatpush2.bf16.msra.mxu0 0
      %283 = vmatprep.subr.bf16.mxu0 0
      %284 = vmatpush2.bf16.msra.mxu0 0
      %285 = vmatprep.subr.bf16.mxu0 0
      %286 = vmatpush2.bf16.msra.mxu0 0
      %287 = vmatprep.subr.bf16.mxu0 0
      %288 = vmatpush2.bf16.msra.mxu0 0
      %289 = vmatprep.subr.bf16.mxu0 0
      %290 = vmatpush2.bf16.msra.mxu0 0
      %291 = vmatprep.subr.bf16.mxu0 0
      %292 = vmatpush2.bf16.msra.mxu0 0
      %293 = vmatprep.mubr.bf16.mxu0 0
      %294 = vmatmul.mubr.bf16.gmra.mxu0 %v259
      %v295 = vpop.f32.mrf.mxu0
      %v296 = vadd.f32 %v250, %v295
      %v297 = vpop.f32.mrf.mxu0
      %v298 = vadd.f32 %v252, %v297
      %v299 = vpop.f32.mrf.mxu0
      %v300 = vadd.f32 %v254, %v299
      %v301 = vpop.f32.mrf.mxu0
      %v302 = vadd.f32 %v256, %v301
      %303 = vdwg.mxu0
      %v305 = vsel %vm211, %v170, 0
      %307 = vmatprep.subr.bf16.mxu0 0
      %308 = vmatpush1.bf16.msra.mxu0 0
      %309 = vmatprep.subr.bf16.mxu0 0
      %310 = vmatpush1.bf16.msra.mxu0 0
      %311 = vmatprep.subr.bf16.mxu0 0
      %312 = vmatpush1.bf16.msra.mxu0 0
      %313 = vmatprep.subr.bf16.mxu0 0
      %314 = vmatpush1.bf16.msra.mxu0 0
      %315 = vmatprep.subr.bf16.mxu0 %v202
      %316 = vmatpush1.bf16.msra.mxu0 %v201
      %317 = vmatprep.subr.bf16.mxu0 %v200
      %318 = vmatpush1.bf16.msra.mxu0 %v199
      %319 = vmatprep.subr.bf16.mxu0 %v198
      %320 = vmatpush1.bf16.msra.mxu0 %v197
      %321 = vmatprep.subr.bf16.mxu0 %v196
      %322 = vmatpush1.bf16.msra.mxu0 %v195
      %323 = vmatprep.subr.bf16.mxu0 0
      %324 = vmatpush2.bf16.msra.mxu0 0
      %325 = vmatprep.subr.bf16.mxu0 0
      %326 = vmatpush2.bf16.msra.mxu0 0
      %327 = vmatprep.subr.bf16.mxu0 0
      %328 = vmatpush2.bf16.msra.mxu0 0
      %329 = vmatprep.subr.bf16.mxu0 0
      %330 = vmatpush2.bf16.msra.mxu0 0
      %331 = vmatprep.subr.bf16.mxu0 0
      %332 = vmatpush2.bf16.msra.mxu0 0
      %333 = vmatprep.subr.bf16.mxu0 0
      %334 = vmatpush2.bf16.msra.mxu0 0
      %335 = vmatprep.subr.bf16.mxu0 0
      %336 = vmatpush2.bf16.msra.mxu0 0
      %337 = vmatprep.subr.bf16.mxu0 0
      %338 = vmatpush2.bf16.msra.mxu0 0
      %339 = vmatprep.mubr.bf16.mxu0 0
      %340 = vmatmul.mubr.bf16.gmra.mxu0 %v305
      %v341 = vpop.f32.mrf.mxu0
      %v342 = vadd.f32 0.0, %v341
      %v343 = vpop.f32.mrf.mxu0
      %v344 = vadd.f32 0.0, %v343
      %v345 = vpop.f32.mrf.mxu0
      %v346 = vadd.f32 0.0, %v345
      %v347 = vpop.f32.mrf.mxu0
      %v348 = vadd.f32 0.0, %v347
      %349 = vdwg.mxu0
      %v350 = vadd.f32 %v296, %v342
      %v351 = vadd.f32 %v298, %v344
      %v352 = vadd.f32 %v300, %v346
      %v353 = vadd.f32 %v302, %v348
      %354 = vst [vmem:[%s147] sm:$0xff] %v350
      %355 = vst [vmem:[%s147 + $0x8] sm:$0xff] %v351
      %356 = vst [vmem:[%s147 + $0x10] sm:$0xff] %v352
      %357 = vst [vmem:[%s147 + $0x18] sm:$0xff] %v353
      %s358 = smul.u32 2, %s13
      %p359 = scmp.lt.s32.totalorder %s358, 3
      %s360 = scalar_select %p359, %s358, 3
      %s361 = smul.addr %s360, 2
      %s362 = smul.addr %s361, 8
      %s363 = scalar_lea.vmem %s2, %s362
      // Predicated region
      $region29: #{unpooling2d_nearest.1} parent=27 // pred_check
        %p364 = pneg %p78
      $region30: #{unpooling2d_nearest.1} parent=27 // pred_check_branch
        %366 = sbr.rel (%p364) target = $region32
      $region31: #{unpooling2d_nearest.1} parent=27 // pred_region
        %s367 = smul.u32 2, %s13
      $region32: #{unpooling2d_nearest.1} parent=27 // pred_fallthru
        _
    $region28: #{unpooling2d_nearest.1} parent=5 // pred_fallthru
      _
    %p368 = scmp.le.s32.totalorder 2, %s8
    // Predicated region
    $region33: #{unpooling2d_nearest.1} parent=5 // pred_check
      %p369 = pneg %p368
    $region34: #{unpooling2d_nearest.1} parent=5 // pred_check_branch
      %371 = sbr.rel (%p369) target = $region36
    $region35: #{unpooling2d_nearest.1} parent=5 // pred_region
      %s372 = ssub.s32 %s8, 2
      // Predicated region
      $region37: #{unpooling2d_nearest.1} parent=35 // pred_check
        %p373 = pneg %p84
      $region38: #{unpooling2d_nearest.1} parent=35 // pred_check_branch
        %375 = sbr.rel (%p373) target = $region40
      $region39: #{unpooling2d_nearest.1} parent=35 // pred_region
        %s376 = smul.u32 2, %s14
        %p377 = scmp.lt.s32.totalorder %s376, 3
        %s378 = scalar_select %p377, %s376, 3
        %s379 = smul.addr %s378, 2
        %s380 = smul.addr %s379, 8
        %s381 = scalar_lea.vmem %s2, %s380
      $region40: #{unpooling2d_nearest.1} parent=35 // pred_fallthru
        _
    $region36: #{unpooling2d_nearest.1} parent=5 // pred_fallthru
      _
  $region6: #{unpooling2d_nearest.1} parent=0 // loop_footer
    %s12 = sadd.s32 1, %s8
  $region7: #{unpooling2d_nearest.1} parent=0 // loop_footer_branch
    %7 = sbr.rel target = $region3
  $region8: #{unpooling2d_nearest.1} parent=0 // loop_exit
    _

</llo_original>
